<compile_context>
chip_gen: v6e
topology: v6e:2x2x1
jax: 0.10.0
libtpu: 0.0.40
codegen_flags: <defaults>
</compile_context>

<pallas_src>
import functools

import jax
import jax.numpy as jnp
from jax import lax
from jax.experimental import pallas as pl
from jax.experimental.pallas import tpu as pltpu


def gat_project_kernel(x_ref, w_ref, al_ref, ar_ref, z_ref, el_ref, er_ref):
    """Per-head feature transform + attention logit terms (computed once)."""
    # x_ref: (N, F_in)   w_ref: (1, F_in, D)   al/ar_ref: (1, 1, D)
    # z_ref: (1, N, D)   el_ref: (1, 1, N)     er_ref: (1, N, 1)
    z = jnp.dot(x_ref[...], w_ref[0], preferred_element_type=jnp.float32)
    z_ref[0] = z.astype(z_ref.dtype)
    # el (source term) laid out as a lane-row [1, N]: a_l @ z^T on the MXU,
    # avoiding any in-kernel transpose.
    el_ref[0] = lax.dot_general(
        al_ref[0], z, (((1,), (1,)), ((), ())),
        preferred_element_type=jnp.float32)
    # er (destination term) as a sublane-column [N, 1] via a VPU reduce.
    er_ref[0] = jnp.sum(z * ar_ref[0], axis=-1, keepdims=True)


def gat_attend_kernel(adj_ref, z_ref, el_ref, er_ref, b_ref, o_ref, *,
                      negative_slope):
    """Masked softmax attention + aggregation + bias + module-level ELU."""
    # adj_ref: (tile_r, N)  z_ref: (1, N, D)  el_ref: (1, 1, N)
    # er_ref: (1, tile_r, 1)  b_ref: (1, 1, D)  o_ref: (1, tile_r, D)
    adj = adj_ref[...]
    logits = er_ref[0] + el_ref[0]                       # [tile_r, N]
    logits = jnp.where(logits >= 0, logits, negative_slope * logits)
    masked = jnp.where(adj > 0, logits, jnp.float32(-1e30))
    m = jnp.max(masked, axis=-1, keepdims=True)          # [tile_r, 1]
    p = jnp.where(adj > 0, jnp.exp(masked - m), 0.0)     # zero fully-masked rows
    denom = jnp.sum(p, axis=-1, keepdims=True)
    alpha = p / jnp.maximum(denom, jnp.float32(1e-20))
    out = jnp.dot(alpha, z_ref[0], preferred_element_type=jnp.float32)
    out = out + b_ref[0]
    # Module-level ELU activation, fused here (elementwise, so per-head is OK).
    o_ref[0] = jnp.where(out > 0, out, jnp.exp(out) - 1.0).astype(o_ref.dtype)


def gat_layer(adj, x, w, a_l, a_r, b, *, tile_r=None, negative_slope=0.2):
    """One GATConv layer + ELU.  Returns the flattened [N, H*D] activations."""
    N = adj.shape[0]
    H, f_in, d = w.shape
    assert x.shape == (N, f_in)
    if tile_r is None:
        tile_r = min(N, 256)     # 256-row tiles on big graphs (MXU M-dim), N here
    assert N % tile_r == 0 and tile_r % 8 == 0

    # --- Kernel A: hoisted per-head projection (each head's X@W_h is unique
    # work, so the head grid never recomputes anything). -----------------------
    z, el, er = pl.pallas_call(
        gat_project_kernel,
        out_shape=(jax.ShapeDtypeStruct((H, N, d), jnp.float32),
                   jax.ShapeDtypeStruct((H, 1, N), jnp.float32),
                   jax.ShapeDtypeStruct((H, N, 1), jnp.float32)),
        grid_spec=pltpu.PrefetchScalarGridSpec(
            num_scalar_prefetch=0,
            grid=(H,),
            in_specs=[
                pl.BlockSpec((N, f_in), lambda h: (0, 0)),      # X, resident
                pl.BlockSpec((1, f_in, d), lambda h: (h, 0, 0)),  # W_h
                pl.BlockSpec((1, 1, d), lambda h: (h, 0, 0)),     # a_l_h
                pl.BlockSpec((1, 1, d), lambda h: (h, 0, 0)),     # a_r_h
            ],
            out_specs=[
                pl.BlockSpec((1, N, d), lambda h: (h, 0, 0)),
                pl.BlockSpec((1, 1, N), lambda h: (h, 0, 0)),
                pl.BlockSpec((1, N, 1), lambda h: (h, 0, 0)),
            ]),
        compiler_params=pltpu.CompilerParams(
            dimension_semantics=("parallel",)),
    )(x, w, a_l, a_r)

    # --- Kernel B: masked softmax + aggregation, tiled over destination rows.
    # Both axes are fully parallel (each output block written exactly once).
    # TODO(synk): for graphs where a [tile_r, N] adj stripe no longer fits VMEM,
    # add a source-column (K) tiling with a flash-style online softmax.
    out = pl.pallas_call(
        functools.partial(gat_attend_kernel, negative_slope=negative_slope),
        out_shape=jax.ShapeDtypeStruct((H, N, d), jnp.float32),
        grid_spec=pltpu.PrefetchScalarGridSpec(
            num_scalar_prefetch=0,
            grid=(H, N // tile_r),
            in_specs=[
                pl.BlockSpec((tile_r, N), lambda h, r: (r, 0)),      # adj rows
                pl.BlockSpec((1, N, d), lambda h, r: (h, 0, 0)),     # Z_h
                pl.BlockSpec((1, 1, N), lambda h, r: (h, 0, 0)),     # el_h row
                pl.BlockSpec((1, tile_r, 1), lambda h, r: (h, r, 0)),  # er_h col
                pl.BlockSpec((1, 1, d), lambda h, r: (h, 0, 0)),     # bias_h
            ],
            out_specs=pl.BlockSpec((1, tile_r, d), lambda h, r: (h, r, 0)),
        ),
        compiler_params=pltpu.CompilerParams(
            dimension_semantics=("parallel", "parallel")),
    )(adj, z, el, er, b)

    # Concatenate heads: [H, N, D] -> [N, H*D] (plain-XLA layout glue).
    return jnp.transpose(out, (1, 0, 2)).reshape(N, H * d)


class GATPallas:
    """Mirror of the PyTorch GAT module (stack of GATConv layers + ELU)."""

    def __init__(self, in_feature, layers=(64,), num_heads=8,
                 drop_out_rate=0, key=None):
        dims = [in_feature] + list(layers)
        if len(dims) < 2:
            raise Exception("sorry, you need at least two layer")
        key = jax.random.PRNGKey(42) if key is None else key
        self.num_heads = num_heads
        self.params = []
        for i in range(len(dims) - 1):
            f_in = dims[i] * (num_heads ** i)     # previous layer's H*D (flattened)
            d_out = dims[i + 1]
            key, kw, kl, kr = jax.random.split(key, 4)
            # Xavier-normal-style init with gain sqrt(2) (DGL GATConv default).
            std_w = (2.0 ** 0.5) * (2.0 / (f_in + d_out)) ** 0.5
            std_a = (2.0 ** 0.5) * (2.0 / (1 + d_out)) ** 0.5
            w = std_w * jax.random.normal(kw, (num_heads, f_in, d_out), jnp.float32)
            a_l = std_a * jax.random.normal(kl, (num_heads, 1, d_out), jnp.float32)
            a_r = std_a * jax.random.normal(kr, (num_heads, 1, d_out), jnp.float32)
            b = jnp.zeros((num_heads, 1, d_out), jnp.float32)
            self.params.append((w, a_l, a_r, b))
        # TODO(synk): Dropout / GATConv feat_drop & attn_drop have rate 0 in the
        # spec's forward, i.e. no-ops; not implemented in the kernels.

    def __call__(self, adj, x):
        for (w, a_l, a_r, b) in self.params:
            x = gat_layer(adj, x, w, a_l, a_r, b)
        return x


def _reference(adj, x, params, negative_slope=0.2):
    """Pure-JAX reference (same math, high-precision einsums)."""
    hp = jax.lax.Precision.HIGHEST
    N = x.shape[0]
    for (w, a_l, a_r, b) in params:
        H, f_in, d = w.shape
        z = jnp.einsum('nf,hfd->hnd', x, w, precision=hp)              # [H,N,D]
        el = jnp.einsum('hnd,hud->hun', z, a_l, precision=hp)          # [H,1,N]
        er = jnp.einsum('hnd,hud->hnu', z, a_r, precision=hp)          # [H,N,1]
        logits = er + el                                               # [H,N,N]
        logits = jnp.where(logits >= 0, logits, negative_slope * logits)
        mask = (adj > 0)[None, :, :]
        masked = jnp.where(mask, logits, -1e30)
        m = masked.max(axis=-1, keepdims=True)
        p = jnp.where(mask, jnp.exp(masked - m), 0.0)
        alpha = p / jnp.maximum(p.sum(axis=-1, keepdims=True), 1e-20)
        out = jnp.einsum('hij,hjd->hid', alpha, z, precision=hp) + b   # [H,N,D]
        out = jnp.transpose(out, (1, 0, 2)).reshape(N, H * d)
        x = jnp.where(out > 0, out, jnp.exp(out) - 1.0)                # ELU
    return x


if __name__ == "__main__":
    key = jax.random.PRNGKey(0)
    N, in_feature = 64, 16
    layer_sizes = [16, 8]
    num_heads = 4

    k_adj, k_x = jax.random.split(key)
    # Symmetric binary adjacency with self-loops (GAT needs no normalization;
    # self-loops guarantee every node has at least one incoming edge, matching
    # DGL's zero-in-degree requirement).
    a = (jax.random.uniform(k_adj, (N, N)) < 0.15).astype(jnp.float32)
    adj = jnp.maximum(jnp.maximum(a, a.T), jnp.eye(N, dtype=jnp.float32))
    x = jax.random.normal(k_x, (N, in_feature), dtype=jnp.float32)

    model = GATPallas(in_feature, layers=layer_sizes, num_heads=num_heads)
    out = model(adj, x)
    jax.block_until_ready(out)

    ref = _reference(adj, x, model.params)
    assert out.shape == (N, layer_sizes[-1] * num_heads)
    assert jnp.allclose(out, ref, atol=1e-3, rtol=1e-3), \
        float(jnp.max(jnp.abs(out - ref)))
    print("KERNEL_OK")
</pallas_src>

<mosaic_0001>
module attributes {stable_mosaic.version = 11 : i64} {
  func.func @gat_project_kernel(%arg0: i32, %arg1: memref<64x16xf32, #tpu.memory_space<vmem>>, %arg2: memref<1x16x16xf32, #tpu.memory_space<vmem>>, %arg3: memref<1x1x16xf32, #tpu.memory_space<vmem>>, %arg4: memref<1x1x16xf32, #tpu.memory_space<vmem>>, %arg5: memref<1x64x16xf32, #tpu.memory_space<vmem>>, %arg6: memref<1x1x64xf32, #tpu.memory_space<vmem>>, %arg7: memref<1x64x1xf32, #tpu.memory_space<vmem>>) attributes {dimension_semantics = [#tpu.dimension_semantics<parallel>], iteration_bounds = array<i64: 4>, scalar_prefetch = 0 : i64, scratch_operands = 0 : i64, tpu.core_type = #tpu.core_type<tc>, window_params = [{pipeline_mode = #tpu.pipeline_mode<synchronous>, transform_indices = @transform_0, window_bounds = array<i64: 64, 16>}, {transform_indices = @transform_1, window_bounds = array<i64: 1, 16, 16>}, {transform_indices = @transform_2, window_bounds = array<i64: 1, 1, 16>}, {transform_indices = @transform_3, window_bounds = array<i64: 1, 1, 16>}, {transform_indices = @transform_4, window_bounds = array<i64: 1, 64, 16>}, {transform_indices = @transform_5, window_bounds = array<i64: 1, 1, 64>}, {transform_indices = @transform_6, window_bounds = array<i64: 1, 64, 1>}]} {
    %c0 = arith.constant 0 : index
    %c0_0 = arith.constant 0 : index
    %0 = vector.load %arg1[%c0, %c0_0] : memref<64x16xf32, #tpu.memory_space<vmem>>, vector<64x16xf32>
    %c0_1 = arith.constant 0 : index
    %c0_2 = arith.constant 0 : index
    %c0_3 = arith.constant 0 : index
    %1 = vector.load %arg2[%c0_1, %c0_2, %c0_3] : memref<1x16x16xf32, #tpu.memory_space<vmem>>, vector<1x16x16xf32>
    %2 = vector.shape_cast %1 : vector<1x16x16xf32> to vector<16x16xf32>
    %cst = arith.constant dense<0.000000e+00> : vector<64x16xf32>
    %3 = tpu.matmul %0, %2, %cst {dimension_numbers = #tpu.dot_dimension_numbers<[1], [0], [0], [1], [0, 0, 1, 1], [], []>} : vector<64x16xf32>, vector<16x16xf32>, vector<64x16xf32> -> vector<64x16xf32>
    %c0_4 = arith.constant 0 : index
    %c0_5 = arith.constant 0 : index
    %c0_6 = arith.constant 0 : index
    %4 = vector.load %arg5[%c0_4, %c0_5, %c0_6] : memref<1x64x16xf32, #tpu.memory_space<vmem>>, vector<1x64x16xf32>
    %5 = vector.shape_cast %4 : vector<1x64x16xf32> to vector<64x16xf32>
    %6 = vector.shape_cast %3 : vector<64x16xf32> to vector<1x64x16xf32>
    tpu.vector_store %arg5[%c0_4, %c0_5, %c0_6], %6 {strides = array<i32>} : memref<1x64x16xf32, #tpu.memory_space<vmem>>, vector<1x64x16xf32>,
    %c0_7 = arith.constant 0 : index
    %c0_8 = arith.constant 0 : index
    %c0_9 = arith.constant 0 : index
    %7 = vector.load %arg3[%c0_7, %c0_8, %c0_9] : memref<1x1x16xf32, #tpu.memory_space<vmem>>, vector<1x1x16xf32>
    %8 = vector.shape_cast %7 : vector<1x1x16xf32> to vector<1x16xf32>
    %cst_10 = arith.constant dense<0.000000e+00> : vector<1x64xf32>
    %9 = tpu.matmul %8, %3, %cst_10 {dimension_numbers = #tpu.dot_dimension_numbers<[1], [1], [0], [0], [0, 0, 1, 0], [], []>} : vector<1x16xf32>, vector<64x16xf32>, vector<1x64xf32> -> vector<1x64xf32>
    %c0_11 = arith.constant 0 : index
    %c0_12 = arith.constant 0 : index
    %c0_13 = arith.constant 0 : index
    %10 = vector.load %arg6[%c0_11, %c0_12, %c0_13] : memref<1x1x64xf32, #tpu.memory_space<vmem>>, vector<1x1x64xf32>
    %11 = vector.shape_cast %10 : vector<1x1x64xf32> to vector<1x64xf32>
    %12 = vector.shape_cast %9 : vector<1x64xf32> to vector<1x1x64xf32>
    tpu.vector_store %arg6[%c0_11, %c0_12, %c0_13], %12 {strides = array<i32>} : memref<1x1x64xf32, #tpu.memory_space<vmem>>, vector<1x1x64xf32>,
    %c0_14 = arith.constant 0 : index
    %c0_15 = arith.constant 0 : index
    %c0_16 = arith.constant 0 : index
    %13 = vector.load %arg4[%c0_14, %c0_15, %c0_16] : memref<1x1x16xf32, #tpu.memory_space<vmem>>, vector<1x1x16xf32>
    %14 = vector.shape_cast %13 : vector<1x1x16xf32> to vector<1x16xf32>
    %15 = vector.broadcast %14 : vector<1x16xf32> to vector<64x16xf32>
    %16 = arith.mulf %3, %15 : vector<64x16xf32>
    %cst_17 = arith.constant dense<0.000000e+00> : vector<64xf32>
    %17 = vector.multi_reduction <add>, %16, %cst_17 [1] : vector<64x16xf32> to vector<64xf32>
    %18 = vector.shape_cast %17 : vector<64xf32> to vector<64x1xf32>
    %c0_18 = arith.constant 0 : index
    %c0_19 = arith.constant 0 : index
    %c0_20 = arith.constant 0 : index
    %19 = vector.load %arg7[%c0_18, %c0_19, %c0_20] : memref<1x64x1xf32, #tpu.memory_space<vmem>>, vector<1x64x1xf32>
    %20 = vector.shape_cast %19 : vector<1x64x1xf32> to vector<64x1xf32>
    %21 = vector.shape_cast %18 : vector<64x1xf32> to vector<1x64x1xf32>
    tpu.vector_store %arg7[%c0_18, %c0_19, %c0_20], %21 {strides = array<i32>} : memref<1x64x1xf32, #tpu.memory_space<vmem>>, vector<1x64x1xf32>,
    return
  }
  func.func @transform_0(%arg0: i32) -> (i32, i32) {
    %c0_i32 = arith.constant 0 : i32
    %c0_i32_0 = arith.constant 0 : i32
    %c0_i32_1 = arith.constant 0 : i32
    return %c0_i32, %c0_i32_0 : i32, i32
  }
  func.func @transform_1(%arg0: i32) -> (i32, i32, i32) {
    %c0_i32 = arith.constant 0 : i32
    %c0_i32_0 = arith.constant 0 : i32
    %c0_i32_1 = arith.constant 0 : i32
    return %arg0, %c0_i32, %c0_i32_0 : i32, i32, i32
  }
  func.func @transform_2(%arg0: i32) -> (i32, i32, i32) {
    %c0_i32 = arith.constant 0 : i32
    %c0_i32_0 = arith.constant 0 : i32
    %c0_i32_1 = arith.constant 0 : i32
    return %arg0, %c0_i32, %c0_i32_0 : i32, i32, i32
  }
  func.func @transform_3(%arg0: i32) -> (i32, i32, i32) {
    %c0_i32 = arith.constant 0 : i32
    %c0_i32_0 = arith.constant 0 : i32
    %c0_i32_1 = arith.constant 0 : i32
    return %arg0, %c0_i32, %c0_i32_0 : i32, i32, i32
  }
  func.func @transform_4(%arg0: i32) -> (i32, i32, i32) {
    %c0_i32 = arith.constant 0 : i32
    %c0_i32_0 = arith.constant 0 : i32
    %c0_i32_1 = arith.constant 0 : i32
    return %arg0, %c0_i32, %c0_i32_0 : i32, i32, i32
  }
  func.func @transform_5(%arg0: i32) -> (i32, i32, i32) {
    %c0_i32 = arith.constant 0 : i32
    %c0_i32_0 = arith.constant 0 : i32
    %c0_i32_1 = arith.constant 0 : i32
    return %arg0, %c0_i32, %c0_i32_0 : i32, i32, i32
  }
  func.func @transform_6(%arg0: i32) -> (i32, i32, i32) {
    %c0_i32 = arith.constant 0 : i32
    %c0_i32_0 = arith.constant 0 : i32
    %c0_i32_1 = arith.constant 0 : i32
    return %arg0, %c0_i32, %c0_i32_0 : i32, i32, i32
  }
}

</mosaic_0001>

<llo_original>
// kernel: tpu_custom_call.1
$region0: #{tpu_custom_call.1}
  #allocation0 [shape = 'u32[]', space=smem, size = 0x4, offset = 0x4, fixed_abs, tag = 'smem constant byte address 0x4 - core index']
  #allocation1 [shape = 'u32[144,128]{1,0:T(1,128)}', space=vmem, size = 0x12000, scoped, tag = 'internal scratch']
  %s0 = inlined_call_operand.vmem [shape: f32[64,16], index: 0, kind: input, shape index: {}]
  %s1 = inlined_call_operand.vmem [shape: f32[4,16,16], index: 1, kind: input, shape index: {}]
  %s2 = inlined_call_operand.vmem [shape: f32[4,1,16], index: 2, kind: input, shape index: {}]
  %s3 = inlined_call_operand.vmem [shape: f32[4,1,16], index: 3, kind: input, shape index: {}]
  %s4 = inlined_call_operand.vmem [shape: f32[4,64,16], index: 4, kind: output, shape index: {0}]
  %s5 = inlined_call_operand.hbm [shape: f32[4,1,64], index: 5, kind: output, shape index: {1}]
  %s6 = inlined_call_operand.vmem [shape: f32[4,64,1], index: 6, kind: output, shape index: {2}]
  %7 = xla_tuple %s4, %s5, %s6
  %s8 = sld [smem:[#allocation0]]
  $region65: #{tpu_custom_call.1} parent=0
    _
  %s10 = ssub.s32 1, %s8
  %s11 = scalar_select 0, %s10, %s8
  $region1: #{tpu_custom_call.1} parent=0
    #allocation2 [shape = 'u8[1024]{0}', space=vmem, size = 0x400, scoped, tag = 'output window, operand 1']
    #allocation3 [shape = 's32[2]{0}', space=sflag, size = 0x8, scoped, tag = 'scoped memory for tpu_custom_call.1']
    %12 = vsyncpa [#allocation3], 0
    %s13 = scalar_lea.sflag [#allocation3], 1
    %14 = vsyncpa %s13, 0
    loop: start=0, step=1, limit=6
    $region2: #{tpu_custom_call.1} parent=1 // loop_pre_header
      _
    $region3: #{tpu_custom_call.1} parent=1 // loop_header
      %s16 = sphi 0, %s20
      %p17 = scmp.ge.s32.totalorder %s16, 6
      %s24 = sphi 0, %s24
      %s26 = sphi 0, %s24
      %s27 = sphi 0, %s26
      %s41 = sphi 0, %s27
      %s47 = sphi 0, %s49
      %s50 = sphi 0, %s47
      %s51 = sphi 0, %s50
      %s67 = sphi 0, %s51
      %s73 = sphi 0, %s75
      %s76 = sphi 0, %s73
      %s77 = sphi 0, %s76
      %s93 = sphi 0, %s77
      %s99 = sphi 0, %s101
      %s102 = sphi 0, %s99
      %s103 = sphi 0, %s102
      %s119 = sphi 0, %s103
      %s125 = sphi 0, %s127
      %s128 = sphi 0, %s125
      %s129 = sphi 0, %s128
      %s145 = sphi 0, %s129
      %s151 = sphi 0, %s153
      %s154 = sphi 0, %s151
      %s155 = sphi 0, %s154
      %s171 = sphi 0, %s155
      %s177 = sphi 0, %s179
      %s180 = sphi 0, %s177
      %s181 = sphi 0, %s180
      %s197 = sphi 0, %s181
    $region4: #{tpu_custom_call.1} parent=1 // loop_header_branch
      %19 = sbr.rel (%p17) target = $region8
    $region5: #{tpu_custom_call.1} parent=1 // loop_body
      %s21 = ssub.s32 %s16, 1
      %s22 = ssub.s32 %s16, 2
      %s23 = sadd.s32 %s16, 1
      %s25 = sadd.s32 %s24, 1
      %p28 = scmp.eq.s32.totalorder %s16, 3
      %p29 = scmp.ne.s32.totalorder %s24, %s26
      %p30 = scmp.eq.s32.totalorder %s16, 0
      %p31 = por %p29, %p30
      %p32 = scmp.ne.s32.totalorder %s24, %s26
      %p33 = scmp.eq.s32.totalorder %s21, 3
      %p34 = por %p32, %p33
      %p35 = scmp.ne.s32.totalorder %s26, %s27
      %p36 = scmp.eq.s32.totalorder %s21, 0
      %p37 = por %p35, %p36
      %p38 = scmp.ne.s32.totalorder %s26, %s27
      %p39 = scmp.eq.s32.totalorder %s22, 3
      %p40 = por %p38, %p39
      %p42 = scmp.ne.s32.totalorder %s27, %s41
      %p43 = scmp.eq.s32.totalorder %s22, 0
      %p44 = por %p42, %p43
      %s45 = ssub.s32 %s16, %s23
      %p46 = scmp.eq.s32.totalorder %s45, 0
      %s48 = sadd.s32 %s47, 1
      %s49 = scalar_select %p46, %s47, %s48
      %p52 = pneg %p46
      %p53 = scmp.eq.s32.totalorder %s16, 3
      %p54 = por %p52, %p53
      %p55 = scmp.ne.s32.totalorder %s47, %s50
      %p56 = scmp.eq.s32.totalorder %s16, 0
      %p57 = por %p55, %p56
      %p58 = scmp.ne.s32.totalorder %s47, %s50
      %p59 = scmp.eq.s32.totalorder %s21, 3
      %p60 = por %p58, %p59
      %p61 = scmp.ne.s32.totalorder %s50, %s51
      %p62 = scmp.eq.s32.totalorder %s21, 0
      %p63 = por %p61, %p62
      %p64 = scmp.ne.s32.totalorder %s50, %s51
      %p65 = scmp.eq.s32.totalorder %s22, 3
      %p66 = por %p64, %p65
      %p68 = scmp.ne.s32.totalorder %s51, %s67
      %p69 = scmp.eq.s32.totalorder %s22, 0
      %p70 = por %p68, %p69
      %s71 = ssub.s32 %s16, %s23
      %p72 = scmp.eq.s32.totalorder %s71, 0
      %s74 = sadd.s32 %s73, 1
      %s75 = scalar_select %p72, %s73, %s74
      %p78 = pneg %p72
      %p79 = scmp.eq.s32.totalorder %s16, 3
      %p80 = por %p78, %p79
      %p81 = scmp.ne.s32.totalorder %s73, %s76
      %p82 = scmp.eq.s32.totalorder %s16, 0
      %p83 = por %p81, %p82
      %p84 = scmp.ne.s32.totalorder %s73, %s76
      %p85 = scmp.eq.s32.totalorder %s21, 3
      %p86 = por %p84, %p85
      %p87 = scmp.ne.s32.totalorder %s76, %s77
      %p88 = scmp.eq.s32.totalorder %s21, 0
      %p89 = por %p87, %p88
      %p90 = scmp.ne.s32.totalorder %s76, %s77
      %p91 = scmp.eq.s32.totalorder %s22, 3
      %p92 = por %p90, %p91
      %p94 = scmp.ne.s32.totalorder %s77, %s93
      %p95 = scmp.eq.s32.totalorder %s22, 0
      %p96 = por %p94, %p95
      %s97 = ssub.s32 %s16, %s23
      %p98 = scmp.eq.s32.totalorder %s97, 0
      %s100 = sadd.s32 %s99, 1
      %s101 = scalar_select %p98, %s99, %s100
      %p104 = pneg %p98
      %p105 = scmp.eq.s32.totalorder %s16, 3
      %p106 = por %p104, %p105
      %p107 = scmp.ne.s32.totalorder %s99, %s102
      %p108 = scmp.eq.s32.totalorder %s16, 0
      %p109 = por %p107, %p108
      %p110 = scmp.ne.s32.totalorder %s99, %s102
      %p111 = scmp.eq.s32.totalorder %s21, 3
      %p112 = por %p110, %p111
      %p113 = scmp.ne.s32.totalorder %s102, %s103
      %p114 = scmp.eq.s32.totalorder %s21, 0
      %p115 = por %p113, %p114
      %p116 = scmp.ne.s32.totalorder %s102, %s103
      %p117 = scmp.eq.s32.totalorder %s22, 3
      %p118 = por %p116, %p117
      %p120 = scmp.ne.s32.totalorder %s103, %s119
      %p121 = scmp.eq.s32.totalorder %s22, 0
      %p122 = por %p120, %p121
      %s123 = ssub.s32 %s16, %s23
      %p124 = scmp.eq.s32.totalorder %s123, 0
      %s126 = sadd.s32 %s125, 1
      %s127 = scalar_select %p124, %s125, %s126
      %p130 = pneg %p124
      %p131 = scmp.eq.s32.totalorder %s16, 3
      %p132 = por %p130, %p131
      %p133 = scmp.ne.s32.totalorder %s125, %s128
      %p134 = scmp.eq.s32.totalorder %s16, 0
      %p135 = por %p133, %p134
      %p136 = scmp.ne.s32.totalorder %s125, %s128
      %p137 = scmp.eq.s32.totalorder %s21, 3
      %p138 = por %p136, %p137
      %p139 = scmp.ne.s32.totalorder %s128, %s129
      %p140 = scmp.eq.s32.totalorder %s21, 0
      %p141 = por %p139, %p140
      %p142 = scmp.ne.s32.totalorder %s128, %s129
      %p143 = scmp.eq.s32.totalorder %s22, 3
      %p144 = por %p142, %p143
      %p146 = scmp.ne.s32.totalorder %s129, %s145
      %p147 = scmp.eq.s32.totalorder %s22, 0
      %p148 = por %p146, %p147
      %s149 = ssub.s32 %s16, %s23
      %p150 = scmp.eq.s32.totalorder %s149, 0
      %s152 = sadd.s32 %s151, 1
      %s153 = scalar_select %p150, %s151, %s152
      %p156 = pneg %p150
      %p157 = scmp.eq.s32.totalorder %s16, 3
      %p158 = por %p156, %p157
      %p159 = scmp.ne.s32.totalorder %s151, %s154
      %p160 = scmp.eq.s32.totalorder %s16, 0
      %p161 = por %p159, %p160
      %p162 = scmp.ne.s32.totalorder %s151, %s154
      %p163 = scmp.eq.s32.totalorder %s21, 3
      %p164 = por %p162, %p163
      %p165 = scmp.ne.s32.totalorder %s154, %s155
      %p166 = scmp.eq.s32.totalorder %s21, 0
      %p167 = por %p165, %p166
      %p168 = scmp.ne.s32.totalorder %s154, %s155
      %p169 = scmp.eq.s32.totalorder %s22, 3
      %p170 = por %p168, %p169
      %p172 = scmp.ne.s32.totalorder %s155, %s171
      %p173 = scmp.eq.s32.totalorder %s22, 0
      %p174 = por %p172, %p173
      %s175 = ssub.s32 %s16, %s23
      %p176 = scmp.eq.s32.totalorder %s175, 0
      %s178 = sadd.s32 %s177, 1
      %s179 = scalar_select %p176, %s177, %s178
      %p182 = pneg %p176
      %p183 = scmp.eq.s32.totalorder %s16, 3
      %p184 = por %p182, %p183
      %p185 = scmp.ne.s32.totalorder %s177, %s180
      %p186 = scmp.eq.s32.totalorder %s16, 0
      %p187 = por %p185, %p186
      %p188 = scmp.ne.s32.totalorder %s177, %s180
      %p189 = scmp.eq.s32.totalorder %s21, 3
      %p190 = por %p188, %p189
      %p191 = scmp.ne.s32.totalorder %s180, %s181
      %p192 = scmp.eq.s32.totalorder %s21, 0
      %p193 = por %p191, %p192
      %p194 = scmp.ne.s32.totalorder %s180, %s181
      %p195 = scmp.eq.s32.totalorder %s22, 3
      %p196 = por %p194, %p195
      %p198 = scmp.ne.s32.totalorder %s181, %s197
      %p199 = scmp.eq.s32.totalorder %s22, 0
      %p200 = por %p198, %p199
      %p201 = scmp.le.s32.totalorder 1, %s16
      %p202 = scmp.lt.s32.totalorder %s16, 5
      %p203 = pnand %p201, %p202
      %p204 = pneg %p203
      // Predicated region
      $region9: #{tpu_custom_call.1} parent=5 // pred_check
        _
      $region10: #{tpu_custom_call.1} parent=5 // pred_check_branch
        %206 = sbr.rel (%p203) target = $region12
      $region11: #{tpu_custom_call.1} parent=5 // pred_region
        %s207 = ssub.s32 %s16, 1
        // Predicated region
        $region13: #{tpu_custom_call.1} parent=11 // pred_check
          %p208 = pneg %p37
        $region14: #{tpu_custom_call.1} parent=11 // pred_check_branch
          %210 = sbr.rel (%p208) target = $region16
        $region15: #{tpu_custom_call.1} parent=11 // pred_region
          _
        $region16: #{tpu_custom_call.1} parent=11 // pred_fallthru
          _
      $region12: #{tpu_custom_call.1} parent=5 // pred_fallthru
        _
      %p211 = scmp.lt.s32.totalorder %s16, 4
      // Predicated region
      $region17: #{tpu_custom_call.1} parent=5 // pred_check
        %p212 = pneg %p211
      $region18: #{tpu_custom_call.1} parent=5 // pred_check_branch
        %214 = sbr.rel (%p212) target = $region20
      $region19: #{tpu_custom_call.1} parent=5 // pred_region
        // Predicated region
        $region21: #{tpu_custom_call.1} parent=19 // pred_check
          %p215 = pneg %p57
        $region22: #{tpu_custom_call.1} parent=19 // pred_check_branch
          %217 = sbr.rel (%p215) target = $region24
        $region23: #{tpu_custom_call.1} parent=19 // pred_region
          %p218 = scmp.lt.s32.totalorder %s16, 3
          %s219 = scalar_select %p218, %s16, 3
          %s220 = smul.addr %s219, 2
          %s221 = smul.addr %s220, 8
          %s222 = scalar_lea.vmem %s1, %s221
        $region24: #{tpu_custom_call.1} parent=19 // pred_fallthru
          _
        // Predicated region
        $region25: #{tpu_custom_call.1} parent=19 // pred_check
          %p223 = pneg %p83
        $region26: #{tpu_custom_call.1} parent=19 // pred_check_branch
          %225 = sbr.rel (%p223) target = $region28
        $region27: #{tpu_custom_call.1} parent=19 // pred_region
          %p226 = scmp.lt.s32.totalorder %s16, 3
          %s227 = scalar_select %p226, %s16, 3
          %s228 = scalar_lea.vmem %s2, %s227
        $region28: #{tpu_custom_call.1} parent=19 // pred_fallthru
          _
        // Predicated region
        $region29: #{tpu_custom_call.1} parent=19 // pred_check
          %p229 = pneg %p109
        $region30: #{tpu_custom_call.1} parent=19 // pred_check_branch
          %231 = sbr.rel (%p229) target = $region32
        $region31: #{tpu_custom_call.1} parent=19 // pred_region
          %p232 = scmp.lt.s32.totalorder %s16, 3
          %s233 = scalar_select %p232, %s16, 3
          %s234 = scalar_lea.vmem %s3, %s233
        $region32: #{tpu_custom_call.1} parent=19 // pred_fallthru
          _
      $region20: #{tpu_custom_call.1} parent=5 // pred_fallthru
        _
      %p235 = scmp.le.s32.totalorder 1, %s16
      %p236 = scmp.lt.s32.totalorder %s16, 5
      %p237 = pnand %p235, %p236
      %p238 = pneg %p237
      // Predicated region
      $region33: #{tpu_custom_call.1} parent=5 // pred_check
        _
      $region34: #{tpu_custom_call.1} parent=5 // pred_check_branch
        %240 = sbr.rel (%p237) target = $region36
      $region35: #{tpu_custom_call.1} parent=5 // pred_region
        %s241 = ssub.s32 %s16, 1
        %p242 = pneg %p37
        %p243 = pneg %p34
        %p244 = scmp.lt.s32.totalorder %s21, 3
        %s245 = scalar_select %p244, %s21, 3
        %s246 = smul.addr %s245, 2
        %s247 = smul.addr %s246, 8
        %s248 = scalar_lea.vmem %s1, %s247
        %p249 = pneg %p63
        %p250 = pneg %p60
        %p251 = scmp.lt.s32.totalorder %s21, 3
        %s252 = scalar_select %p251, %s21, 3
        %s253 = scalar_lea.vmem %s2, %s252
        %p254 = pneg %p89
        %p255 = pneg %p86
        %p256 = scmp.lt.s32.totalorder %s21, 3
        %s257 = scalar_select %p256, %s21, 3
        %s258 = scalar_lea.vmem %s3, %s257
        %p259 = pneg %p115
        %p260 = pneg %p112
        %p261 = pneg %p141
        %p262 = pneg %p138
        %p263 = scmp.lt.s32.totalorder %s21, 3
        %s264 = scalar_select %p263, %s21, 3
        %s265 = smul.addr %s264, 8
        %s266 = smul.addr %s265, 8
        %s267 = scalar_lea.vmem %s4, %s266
        %p268 = pneg %p167
        %p269 = pneg %p164
        %s270 = sand.u32 %s154, 1
        %s271 = scalar_lea.sflag [#allocation3], %s270
        %s272 = sand.u32 %s154, 1
        %s273 = scalar_lea.vmem [#allocation2], %s272
        %p274 = pneg %p193
        %p275 = pneg %p190
        %p276 = scmp.lt.s32.totalorder %s21, 3
        %s277 = scalar_select %p276, %s21, 3
        %s278 = smul.addr %s277, 8
        %s279 = smul.addr %s278, 8
        %s280 = scalar_lea.vmem %s6, %s279
        %p281 = scmp.lt.s32.totalorder %s21, 3
        %s282 = scalar_select %p281, %s21, 3
        %s283 = smul.addr %s282, 2
        %s284 = smul.addr %s283, 8
        %s285 = scalar_lea.vmem %s1, %s284
        %p286 = scmp.lt.s32.totalorder %s21, 3
        %s287 = scalar_select %p286, %s21, 3
        %s288 = scalar_lea.vmem %s2, %s287
        %p289 = scmp.lt.s32.totalorder %s21, 3
        %s290 = scalar_select %p289, %s21, 3
        %s291 = scalar_lea.vmem %s3, %s290
        %p292 = scmp.lt.s32.totalorder %s21, 3
        %s293 = scalar_select %p292, %s21, 3
        %s294 = smul.addr %s293, 8
        %s295 = smul.addr %s294, 8
        %s296 = scalar_lea.vmem %s4, %s295
        %p297 = scmp.lt.s32.totalorder %s21, 3
        %s298 = scalar_select %p297, %s21, 3
        %s299 = smul.addr %s298, 8
        %s300 = smul.addr %s299, 8
        %s301 = scalar_lea.vmem %s6, %s300
        %v302 = vld [vmem:[%s0] sm:$0xff]
        %v303 = vld [vmem:[%s0 + $0x8] sm:$0xff]
        %v304 = vld [vmem:[%s0 + $0x10] sm:$0xff]
        %v305 = vld [vmem:[%s0 + $0x18] sm:$0xff]
        %v306 = vld [vmem:[%s0 + $0x20] sm:$0xff]
        %v307 = vld [vmem:[%s0 + $0x28] sm:$0xff]
        %v308 = vld [vmem:[%s0 + $0x30] sm:$0xff]
        %v309 = vld [vmem:[%s0 + $0x38] sm:$0xff]
        %v310 = vld [vmem:[%s285] sm:$0xff]
        %v311 = vld [vmem:[%s285 + $0x8] sm:$0xff]
        %vm312 = vcmask 130048
        %v314 = vsel %vm312, %v302, 0
        %v317 = vsel %vm312, %v303, 0
        %v320 = vsel %vm312, %v304, 0
        %v323 = vsel %vm312, %v305, 0
        %v326 = vsel %vm312, %v306, 0
        %v329 = vsel %vm312, %v307, 0
        %v332 = vsel %vm312, %v308, 0
        %v335 = vsel %vm312, %v309, 0
        %337 = vmatprep.subr.mxu0 0.0
        %338 = vmatpush1.msra.mxu0 0.0
        %339 = vmatprep.subr.mxu0 0.0
        %340 = vmatpush1.msra.mxu0 0.0
        %341 = vmatprep.subr.mxu0 0.0
        %342 = vmatpush1.msra.mxu0 0.0
        %343 = vmatprep.subr.mxu0 0.0
        %344 = vmatpush1.msra.mxu0 0.0
        %345 = vmatprep.subr.mxu0 0.0
        %346 = vmatpush1.msra.mxu0 0.0
        %347 = vmatprep.subr.mxu0 0.0
        %348 = vmatpush1.msra.mxu0 0.0
        %349 = vmatprep.subr.mxu0 0.0
        %350 = vmatpush1.msra.mxu0 0.0
        %351 = vmatprep.subr.mxu0 0.0
        %352 = vmatpush1.msra.mxu0 0.0
        %353 = vmatprep.subr.mxu0 0.0
        %354 = vmatpush1.msra.mxu0 0.0
        %355 = vmatprep.subr.mxu0 0.0
        %356 = vmatpush1.msra.mxu0 0.0
        %357 = vmatprep.subr.mxu0 0.0
        %358 = vmatpush1.msra.mxu0 0.0
        %359 = vmatprep.subr.mxu0 0.0
        %360 = vmatpush1.msra.mxu0 0.0
        %361 = vmatprep.subr.mxu0 0.0
        %362 = vmatpush1.msra.mxu0 0.0
        %363 = vmatprep.subr.mxu0 0.0
        %364 = vmatpush1.msra.mxu0 0.0
        %365 = vmatprep.subr.mxu0 0.0
        %366 = vmatpush1.msra.mxu0 %v311
        %367 = vmatprep.subr.mxu0 0.0
        %368 = vmatpush1.msra.mxu0 %v310
        %369 = vmatprep.subr.mxu0 0.0
        %370 = vmatpush2.msra.mxu0 0.0
        %371 = vmatprep.subr.mxu0 0.0
        %372 = vmatpush2.msra.mxu0 0.0
        %373 = vmatprep.subr.mxu0 0.0
        %374 = vmatpush2.msra.mxu0 0.0
        %375 = vmatprep.subr.mxu0 0.0
        %376 = vmatpush2.msra.mxu0 0.0
        %377 = vmatprep.subr.mxu0 0.0
        %378 = vmatpush2.msra.mxu0 0.0
        %379 = vmatprep.subr.mxu0 0.0
        %380 = vmatpush2.msra.mxu0 0.0
        %381 = vmatprep.subr.mxu0 0.0
        %382 = vmatpush2.msra.mxu0 0.0
        %383 = vmatprep.subr.mxu0 0.0
        %384 = vmatpush2.msra.mxu0 0.0
        %385 = vmatprep.subr.mxu0 0.0
        %386 = vmatpush2.msra.mxu0 0.0
        %387 = vmatprep.subr.mxu0 0.0
        %388 = vmatpush2.msra.mxu0 0.0
        %389 = vmatprep.subr.mxu0 0.0
        %390 = vmatpush2.msra.mxu0 0.0
        %391 = vmatprep.subr.mxu0 0.0
        %392 = vmatpush2.msra.mxu0 0.0
        %393 = vmatprep.subr.mxu0 0.0
        %394 = vmatpush2.msra.mxu0 0.0
        %395 = vmatprep.subr.mxu0 0.0
        %396 = vmatpush2.msra.mxu0 0.0
        %397 = vmatprep.subr.mxu0 0.0
        %398 = vmatpush2.msra.mxu0 0.0
        %399 = vmatprep.subr.mxu0 0.0
        %400 = vmatpush2.msra.mxu0 0.0
        %401 = vmatprep.mubr.f32.mxu0 0.0
        %402 = vmatmul.mubr.f32.gmra.mxu0 %v314
        %v403 = vpop.f32.mrf.mxu0
        %v404 = vadd.f32 0.0, %v403
        %v405 = vpop.f32.mrf.mxu0
        %406 = vmatprep.mubr.f32.mxu0 0.0
        %407 = vmatmul.mubr.f32.gmra.mxu0 %v317
        %v408 = vpop.f32.mrf.mxu0
        %v409 = vadd.f32 0.0, %v408
        %v410 = vpop.f32.mrf.mxu0
        %411 = vmatprep.mubr.f32.mxu0 0.0
        %412 = vmatmul.mubr.f32.gmra.mxu0 %v320
        %v413 = vpop.f32.mrf.mxu0
        %v414 = vadd.f32 0.0, %v413
        %v415 = vpop.f32.mrf.mxu0
        %416 = vmatprep.mubr.f32.mxu0 0.0
        %417 = vmatmul.mubr.f32.gmra.mxu0 %v323
        %v418 = vpop.f32.mrf.mxu0
        %v419 = vadd.f32 0.0, %v418
        %v420 = vpop.f32.mrf.mxu0
        %421 = vmatprep.mubr.f32.mxu0 0.0
        %422 = vmatmul.mubr.f32.gmra.mxu0 %v326
        %v423 = vpop.f32.mrf.mxu0
        %v424 = vadd.f32 0.0, %v423
        %v425 = vpop.f32.mrf.mxu0
        %426 = vmatprep.mubr.f32.mxu0 0.0
        %427 = vmatmul.mubr.f32.gmra.mxu0 %v329
        %v428 = vpop.f32.mrf.mxu0
        %v429 = vadd.f32 0.0, %v428
        %v430 = vpop.f32.mrf.mxu0
        %431 = vmatprep.mubr.f32.mxu0 0.0
        %432 = vmatmul.mubr.f32.gmra.mxu0 %v332
        %v433 = vpop.f32.mrf.mxu0
        %v434 = vadd.f32 0.0, %v433
        %v435 = vpop.f32.mrf.mxu0
        %436 = vmatprep.mubr.f32.mxu0 0.0
        %437 = vmatmul.mubr.f32.gmra.mxu0 %v335
        %v438 = vpop.f32.mrf.mxu0
        %v439 = vadd.f32 0.0, %v438
        %v440 = vpop.f32.mrf.mxu0
        %441 = vdwg.mxu0
        %442 = vst.msk [vmem:[%s296] sm:$0xff] %vm312, %v404
        %443 = vst.msk [vmem:[%s296 + $0x8] sm:$0xff] %vm312, %v409
        %444 = vst.msk [vmem:[%s296 + $0x10] sm:$0xff] %vm312, %v414
        %445 = vst.msk [vmem:[%s296 + $0x18] sm:$0xff] %vm312, %v419
        %446 = vst.msk [vmem:[%s296 + $0x20] sm:$0xff] %vm312, %v424
        %447 = vst.msk [vmem:[%s296 + $0x28] sm:$0xff] %vm312, %v429
        %448 = vst.msk [vmem:[%s296 + $0x30] sm:$0xff] %vm312, %v434
        %449 = vst.msk [vmem:[%s296 + $0x38] sm:$0xff] %vm312, %v439
        %v450 = vld [vmem:[%s288] sm:$0x1]
        %v452 = vsel %vm312, %v450, 0
        %v455 = vsel %vm312, %v404, 0
        %v458 = vsel %vm312, %v409, 0
        %v461 = vsel %vm312, %v414, 0
        %v464 = vsel %vm312, %v419, 0
        %v467 = vsel %vm312, %v424, 0
        %v470 = vsel %vm312, %v429, 0
        %v473 = vsel %vm312, %v434, 0
        %v476 = vsel %vm312, %v439, 0
        %478 = vmatprep.subr.mxu0 0.0
        %479 = vmatpush1.xpose.msra.mxu0 0.0
        %480 = vmatprep.subr.mxu0 0.0
        %481 = vmatpush1.xpose.msra.mxu0 0.0
        %482 = vmatprep.subr.mxu0 0.0
        %483 = vmatpush1.xpose.msra.mxu0 0.0
        %484 = vmatprep.subr.mxu0 0.0
        %485 = vmatpush1.xpose.msra.mxu0 0.0
        %486 = vmatprep.subr.mxu0 0.0
        %487 = vmatpush1.xpose.msra.mxu0 0.0
        %488 = vmatprep.subr.mxu0 0.0
        %489 = vmatpush1.xpose.msra.mxu0 0.0
        %490 = vmatprep.subr.mxu0 0.0
        %491 = vmatpush1.xpose.msra.mxu0 0.0
        %492 = vmatprep.subr.mxu0 0.0
        %493 = vmatpush1.xpose.msra.mxu0 0.0
        %494 = vmatprep.subr.mxu0 0.0
        %495 = vmatpush1.xpose.msra.mxu0 %v476
        %496 = vmatprep.subr.mxu0 0.0
        %497 = vmatpush1.xpose.msra.mxu0 %v473
        %498 = vmatprep.subr.mxu0 0.0
        %499 = vmatpush1.xpose.msra.mxu0 %v470
        %500 = vmatprep.subr.mxu0 0.0
        %501 = vmatpush1.xpose.msra.mxu0 %v467
        %502 = vmatprep.subr.mxu0 0.0
        %503 = vmatpush1.xpose.msra.mxu0 %v464
        %504 = vmatprep.subr.mxu0 0.0
        %505 = vmatpush1.xpose.msra.mxu0 %v461
        %506 = vmatprep.subr.mxu0 0.0
        %507 = vmatpush1.xpose.msra.mxu0 %v458
        %508 = vmatprep.subr.mxu0 0.0
        %509 = vmatpush1.xpose.msra.mxu0 %v455
        %510 = vmatprep.subr.mxu0 0.0
        %511 = vmatpush2.xpose.msra.mxu0 0.0
        %512 = vmatprep.subr.mxu0 0.0
        %513 = vmatpush2.xpose.msra.mxu0 0.0
        %514 = vmatprep.subr.mxu0 0.0
        %515 = vmatpush2.xpose.msra.mxu0 0.0
        %516 = vmatprep.subr.mxu0 0.0
        %517 = vmatpush2.xpose.msra.mxu0 0.0
        %518 = vmatprep.subr.mxu0 0.0
        %519 = vmatpush2.xpose.msra.mxu0 0.0
        %520 = vmatprep.subr.mxu0 0.0
        %521 = vmatpush2.xpose.msra.mxu0 0.0
        %522 = vmatprep.subr.mxu0 0.0
        %523 = vmatpush2.xpose.msra.mxu0 0.0
        %524 = vmatprep.subr.mxu0 0.0
        %525 = vmatpush2.xpose.msra.mxu0 0.0
        %526 = vmatprep.subr.mxu0 0.0
        %527 = vmatpush2.xpose.msra.mxu0 0.0
        %528 = vmatprep.subr.mxu0 0.0
        %529 = vmatpush2.xpose.msra.mxu0 0.0
        %530 = vmatprep.subr.mxu0 0.0
        %531 = vmatpush2.xpose.msra.mxu0 0.0
        %532 = vmatprep.subr.mxu0 0.0
        %533 = vmatpush2.xpose.msra.mxu0 0.0
        %534 = vmatprep.subr.mxu0 0.0
        %535 = vmatpush2.xpose.msra.mxu0 0.0
        %536 = vmatprep.subr.mxu0 0.0
        %537 = vmatpush2.xpose.msra.mxu0 0.0
        %538 = vmatprep.subr.mxu0 0.0
        %539 = vmatpush2.xpose.msra.mxu0 0.0
        %540 = vmatprep.subr.mxu0 0.0
        %541 = vmatpush2.xpose.msra.mxu0 0.0
        %542 = vmatprep.mubr.f32.mxu0 0.0
        %543 = vmatmul.mubr.f32.gmra.mxu0 %v452
        %v544 = vpop.f32.mrf.mxu0
        %v545 = vadd.f32 0.0, %v544
        %v546 = vpop.f32.mrf.mxu0
        %547 = vdwg.mxu0
        %vm548 = vcmask 516096
        %549 = vst.msk [vmem:[%s273] sm:$0x1] %vm548, %v545
        %v550 = vld [vmem:[%s291] sm:$0x1]
        %v552 = vlaneseq
        %v553 = vshrl.u32 %v552, 7
        %v554 = vsub.s32 0, %v553
        %v555 = vrot.slane %v550, %v554
        %v557 = vmul.f32 %v404, %v555
        %v558 = vmul.f32 %v409, %v555
        %v559 = vmul.f32 %v414, %v555
        %v560 = vmul.f32 %v419, %v555
        %v561 = vmul.f32 %v424, %v555
        %v562 = vmul.f32 %v429, %v555
        %v563 = vmul.f32 %v434, %v555
        %v564 = vmul.f32 %v439, %v555
        %v565 = vsel %vm312, %v557, 0.0
        %566 = vadd.xlane.f32.xlu0 %v565
        %v567 = vpop.xlane.xlu0 %566
        %v568 = vsel %vm312, %v558, 0.0
        %569 = vadd.xlane.f32.xlu0 %v568
        %v570 = vpop.xlane.xlu0 %569
        %v571 = vsel %vm312, %v559, 0.0
        %572 = vadd.xlane.f32.xlu0 %v571
        %v573 = vpop.xlane.xlu0 %572
        %v574 = vsel %vm312, %v560, 0.0
        %575 = vadd.xlane.f32.xlu0 %v574
        %v576 = vpop.xlane.xlu0 %575
        %v577 = vsel %vm312, %v561, 0.0
        %578 = vadd.xlane.f32.xlu0 %v577
        %v579 = vpop.xlane.xlu0 %578
        %v580 = vsel %vm312, %v562, 0.0
        %581 = vadd.xlane.f32.xlu0 %v580
        %v582 = vpop.xlane.xlu0 %581
        %v583 = vsel %vm312, %v563, 0.0
        %584 = vadd.xlane.f32.xlu0 %v583
        %v585 = vpop.xlane.xlu0 %584
        %v586 = vsel %vm312, %v564, 0.0
        %587 = vadd.xlane.f32.xlu0 %v586
        %v588 = vpop.xlane.xlu0 %587
        %vm589 = vcmask 7168
        %590 = vst.msk [vmem:[%s301] sm:$0xff] %vm589, %v567
        %591 = vst.msk [vmem:[%s301 + $0x8] sm:$0xff] %vm589, %v570
        %592 = vst.msk [vmem:[%s301 + $0x10] sm:$0xff] %vm589, %v573
        %593 = vst.msk [vmem:[%s301 + $0x18] sm:$0xff] %vm589, %v576
        %594 = vst.msk [vmem:[%s301 + $0x20] sm:$0xff] %vm589, %v579
        %595 = vst.msk [vmem:[%s301 + $0x28] sm:$0xff] %vm589, %v582
        %596 = vst.msk [vmem:[%s301 + $0x30] sm:$0xff] %vm589, %v585
        %597 = vst.msk [vmem:[%s301 + $0x38] sm:$0xff] %vm589, %v588
        %p598 = scmp.lt.s32.totalorder %s21, 3
        %s599 = scalar_select %p598, %s21, 3
        %s600 = smul.addr %s599, 8
        %s601 = smul.addr %s600, 8
        %s602 = scalar_lea.vmem %s4, %s601
        %s603 = sand.u32 %s154, 1
        %s604 = scalar_lea.sflag [#allocation3], %s603
        %s605 = sand.u32 %s154, 1
        %s606 = scalar_lea.vmem [#allocation2], %s605
        %p607 = scmp.lt.s32.totalorder %s21, 3
        %s608 = scalar_select %p607, %s21, 3
        %s609 = smul.addr %s608, 8
        %s610 = smul.addr %s609, 8
        %s611 = scalar_lea.vmem %s6, %s610
        // Predicated region
        $region37: #{tpu_custom_call.1} parent=35 // pred_check
          %p612 = pneg %p138
        $region38: #{tpu_custom_call.1} parent=35 // pred_check_branch
          %614 = sbr.rel (%p612) target = $region40
        $region39: #{tpu_custom_call.1} parent=35 // pred_region
          _
        $region40: #{tpu_custom_call.1} parent=35 // pred_fallthru
          _
        // Predicated region
        $region41: #{tpu_custom_call.1} parent=35 // pred_check
          %p615 = pneg %p164
        $region42: #{tpu_custom_call.1} parent=35 // pred_check_branch
          %617 = sbr.rel (%p615) target = $region44
        $region43: #{tpu_custom_call.1} parent=35 // pred_region
          %s619 = ssub.s32 16, 16
          %620 = vsyncadd %s604, %s619
          %s621 = smul.addr %s21, 16
          %s622 = scalar_lea.hbm %s5, %s621
          %s624 = sshll.u32 %s606, 4
          %s625 = int_to_ptr.vmem [resolvable:$true] %s624
          %627 = dma.vmem_to_hbm [thread:$0]  %s625, 16, %s622, %s604
        $region44: #{tpu_custom_call.1} parent=35 // pred_fallthru
          _
        // Predicated region
        $region45: #{tpu_custom_call.1} parent=35 // pred_check
          %p628 = pneg %p190
        $region46: #{tpu_custom_call.1} parent=35 // pred_check_branch
          %630 = sbr.rel (%p628) target = $region48
        $region47: #{tpu_custom_call.1} parent=35 // pred_region
          _
        $region48: #{tpu_custom_call.1} parent=35 // pred_fallthru
          _
      $region36: #{tpu_custom_call.1} parent=5 // pred_fallthru
        _
      %p631 = scmp.le.s32.totalorder 2, %s16
      // Predicated region
      $region49: #{tpu_custom_call.1} parent=5 // pred_check
        %p632 = pneg %p631
      $region50: #{tpu_custom_call.1} parent=5 // pred_check_branch
        %634 = sbr.rel (%p632) target = $region52
      $region51: #{tpu_custom_call.1} parent=5 // pred_region
        %s635 = ssub.s32 %s16, 2
        // Predicated region
        $region53: #{tpu_custom_call.1} parent=51 // pred_check
          %p636 = pneg %p144
        $region54: #{tpu_custom_call.1} parent=51 // pred_check_branch
          %638 = sbr.rel (%p636) target = $region56
        $region55: #{tpu_custom_call.1} parent=51 // pred_region
          %p639 = scmp.lt.s32.totalorder %s22, 3
          %s640 = scalar_select %p639, %s22, 3
          %s641 = smul.addr %s640, 8
          %s642 = smul.addr %s641, 8
          %s643 = scalar_lea.vmem %s4, %s642
        $region56: #{tpu_custom_call.1} parent=51 // pred_fallthru
          _
        // Predicated region
        $region57: #{tpu_custom_call.1} parent=51 // pred_check
          %p644 = pneg %p170
        $region58: #{tpu_custom_call.1} parent=51 // pred_check_branch
          %646 = sbr.rel (%p644) target = $region60
        $region59: #{tpu_custom_call.1} parent=51 // pred_region
          %s647 = sand.u32 %s155, 1
          %s648 = scalar_lea.sflag [#allocation3], %s647
          %s649 = sand.u32 %s155, 1
          %s650 = scalar_lea.vmem [#allocation2], %s649
          %651 = dma.done %s648, 16
        $region60: #{tpu_custom_call.1} parent=51 // pred_fallthru
          _
        // Predicated region
        $region61: #{tpu_custom_call.1} parent=51 // pred_check
          %p652 = pneg %p196
        $region62: #{tpu_custom_call.1} parent=51 // pred_check_branch
          %654 = sbr.rel (%p652) target = $region64
        $region63: #{tpu_custom_call.1} parent=51 // pred_region
          %p655 = scmp.lt.s32.totalorder %s22, 3
          %s656 = scalar_select %p655, %s22, 3
          %s657 = smul.addr %s656, 8
          %s658 = smul.addr %s657, 8
          %s659 = scalar_lea.vmem %s6, %s658
        $region64: #{tpu_custom_call.1} parent=51 // pred_fallthru
          _
      $region52: #{tpu_custom_call.1} parent=5 // pred_fallthru
        _
    $region6: #{tpu_custom_call.1} parent=1 // loop_footer
      %s20 = sadd.s32 1, %s16
    $region7: #{tpu_custom_call.1} parent=1 // loop_footer_branch
      %15 = sbr.rel target = $region3
    $region8: #{tpu_custom_call.1} parent=1 // loop_exit
      _
    %660 = vsyncpa [#allocation3], 1
    %s661 = scalar_lea.sflag [#allocation3], 1
    %662 = vsyncpa %s661, 1

</llo_original>
